<compile_context>
chip_gen: v6e
topology: v6e:2x2x1
jax: 0.10.0
libtpu: 0.0.40
codegen_flags: <defaults>
</compile_context>

<pallas_src>
import functools

import numpy as np
import jax
import jax.numpy as jnp
from jax.experimental import pallas as pl
from jax.experimental.pallas import tpu as pltpu

_VMEM = pl.BlockSpec(memory_space=pltpu.MemorySpace.VMEM)
_LANE_TILE = 256  # lane tile for the gridded conv matmul path


# ----------------------------- Pallas kernels -----------------------------

def _mel_body(frames_bf16, dmat_bf16, fb_t, n_freq_pad):
    # frames: (n_fft, N) bf16, dmat: (2*n_freq_pad, n_fft) bf16 (window folded in),
    # fb_t: (n_mels, n_freq_pad) f32  ->  log-mel (n_mels, N) f32, frame axis in lanes.
    z = jnp.dot(dmat_bf16, frames_bf16, preferred_element_type=jnp.float32)
    power = z[:n_freq_pad, :] ** 2 + z[n_freq_pad:, :] ** 2      # aligned sublane slices
    mel = jnp.dot(fb_t, power, preferred_element_type=jnp.float32)
    return jnp.log(jnp.maximum(mel, 1e-5))


def _mel_kernel(frames_ref, dmat_ref, fb_ref, o_ref, *, n_freq_pad):
    o_ref[...] = _mel_body(frames_ref[...], dmat_ref[...], fb_ref[...], n_freq_pad)


def _convmm_kernel(w_ref, b_ref, x_ref, o_ref, *, lrelu, slope):
    # w: (C_out, C_in*k) bf16, x: (C_in*k, tile_N) bf16, b: (C_out, 1) f32
    y = jnp.dot(w_ref[...], x_ref[...], preferred_element_type=jnp.float32)
    y = y + b_ref[...]
    if lrelu:
        y = jnp.where(y > 0, y, slope * y)
    o_ref[...] = y


def _sum2(x):
    # full reduction of a 2-D block to a (1, 1) array (pattern proven to lower).
    return jnp.sum(jnp.sum(x, axis=1, keepdims=True), axis=0, keepdims=True)


def _loss_tail_kernel(*refs, n_scales, n_feats, n_freq_pad, inv_mel, inv_d, inv_f):
    # refs = (frames_pred, dmat, fb_t, mel_real,
    #         [d_real, d_fake, feat0_real, feat0_fake, feat1_real, feat1_fake] * n_scales,
    #         out_ref)
    o_ref = refs[-1]
    frames_ref, dmat_ref, fb_ref, melr_ref = refs[0], refs[1], refs[2], refs[3]

    mel_pred = _mel_body(frames_ref[...], dmat_ref[...], fb_ref[...], n_freq_pad)
    mel_l1 = _sum2(jnp.abs(mel_pred - melr_ref[...])) * inv_mel          # L1 mean

    disc_s = jnp.zeros((1, 1), jnp.float32)
    adv_s = jnp.zeros((1, 1), jnp.float32)
    fm_s = jnp.zeros((1, 1), jnp.float32)

    idx = 4
    for s in range(n_scales):
        r = refs[idx][...]
        f = refs[idx + 1][...]
        idx += 2
        disc_s = disc_s + (_sum2((r - 1.0) ** 2) + _sum2(f * f)) * inv_d[s]
        adv_s = adv_s + _sum2((f - 1.0) ** 2) * inv_d[s]
        for j in range(n_feats):
            fr_ = refs[idx][...]
            ff_ = refs[idx + 1][...]
            idx += 2
            fm_s = fm_s + _sum2(jnp.abs(ff_ - fr_)) * inv_f[s][j]

    inv_ns = 1.0 / float(n_scales)
    o_ref[:, 0:1] = adv_s * inv_ns + 2.0 * (fm_s * inv_ns) + 45.0 * mel_l1  # loss_gen
    o_ref[:, 1:2] = disc_s * inv_ns                                          # loss_disc


# ----------------------------- kernel wrappers -----------------------------

def matmul_bias_lrelu_t(w_mat, b_col, patches_t, *, lrelu, slope=0.1):
    # w_mat: (C_out, K) bf16, b_col: (C_out, 1) f32, patches_t: (K, N) bf16
    # -> (C_out, N) f32, time axis lane-dense.
    C_out, K = w_mat.shape
    N = patches_t.shape[1]
    kern = functools.partial(_convmm_kernel, lrelu=lrelu, slope=slope)
    out_shape = jax.ShapeDtypeStruct((C_out, N), jnp.float32)

    if N % _LANE_TILE == 0 and N // _LANE_TILE >= 2:
        # Tile the lane (time) axis; "parallel" lets Mosaic shard the grid across
        # the two TensorCores on v7x.
        return pl.pallas_call(
            kern,
            out_shape=out_shape,
            grid_spec=pltpu.PrefetchScalarGridSpec(
                num_scalar_prefetch=0,
                grid=(N // _LANE_TILE,),
                in_specs=[pl.BlockSpec((C_out, K), lambda j: (0, 0)),
                          pl.BlockSpec((C_out, 1), lambda j: (0, 0)),
                          pl.BlockSpec((K, _LANE_TILE), lambda j: (0, j))],
                out_specs=pl.BlockSpec((C_out, _LANE_TILE), lambda j: (0, j))),
            compiler_params=pltpu.CompilerParams(
                dimension_semantics=("parallel",)),
        )(w_mat, b_col, patches_t)

    return pl.pallas_call(
        kern, out_shape=out_shape,
        in_specs=[_VMEM, _VMEM, _VMEM], out_specs=_VMEM,
    )(w_mat, b_col, patches_t)


# ----------------------------- mel spectrogram -----------------------------

def build_mel_params(n_fft=64, hop=32, n_mels=16, sr=16000):
    n_freq = n_fft // 2 + 1
    n_freq_pad = ((n_freq + 7) // 8) * 8          # pad so in-kernel slices are 8-aligned
    n = np.arange(n_fft)
    win = (0.5 - 0.5 * np.cos(2 * np.pi * n / n_fft)).astype(np.float64)
    f = np.arange(n_freq)
    ang = 2.0 * np.pi * np.outer(f, n) / n_fft    # (n_freq, n_fft)
    # Hann window folded directly into the (transposed) DFT matrices, re|im stacked.
    dmat = np.zeros((2 * n_freq_pad, n_fft), np.float32)
    dmat[:n_freq] = np.cos(ang) * win[None, :]
    dmat[n_freq_pad:n_freq_pad + n_freq] = (-np.sin(ang)) * win[None, :]

    def hz2mel(h):
        return 2595.0 * np.log10(1.0 + h / 700.0)

    def mel2hz(m):
        return 700.0 * (10.0 ** (m / 2595.0) - 1.0)

    freqs = np.linspace(0.0, sr / 2.0, n_freq)
    mel_pts = mel2hz(np.linspace(hz2mel(0.0), hz2mel(sr / 2.0), n_mels + 2))
    fb_t = np.zeros((n_mels, n_freq_pad), np.float32)   # transposed, zero in pad cols
    for m in range(n_mels):
        lo, c, hi = mel_pts[m], mel_pts[m + 1], mel_pts[m + 2]
        up = (freqs - lo) / max(c - lo, 1e-6)
        dn = (hi - freqs) / max(hi - c, 1e-6)
        fb_t[m, :n_freq] = np.maximum(0.0, np.minimum(up, dn))

    return dict(dmat=jnp.asarray(dmat, jnp.bfloat16),
                fb_t=jnp.asarray(fb_t),
                n_fft=n_fft, hop=hop, n_mels=n_mels, n_freq_pad=n_freq_pad)


def frame_audio_t(audio, mp):
    # audio: (B, T) f32 -> frames^T (n_fft, B*n_frames) f32 (no center padding).
    # TODO(synk): move the framing into the kernel (overlapping-window BlockSpec)
    # to avoid the 2x HBM expansion at realistic HiFiGAN sizes.
    B, T = audio.shape
    n_fft, hop = mp['n_fft'], mp['hop']
    n_frames = (T - n_fft) // hop + 1
    idx = jnp.arange(n_fft)[:, None] + jnp.arange(n_frames)[None, :] * hop
    fr = audio[:, idx]                               # (B, n_fft, n_frames)
    return jnp.transpose(fr, (1, 0, 2)).reshape(n_fft, B * n_frames)


def mel_spectrogram_t(audio, mp):
    # audio: (B, T) -> log-mel in transposed layout (n_mels, B*n_frames).
    fr = frame_audio_t(audio, mp).astype(jnp.bfloat16)
    N = fr.shape[1]
    return pl.pallas_call(
        functools.partial(_mel_kernel, n_freq_pad=mp['n_freq_pad']),
        out_shape=jax.ShapeDtypeStruct((mp['n_mels'], N), jnp.float32),
        in_specs=[_VMEM, _VMEM, _VMEM],
        out_specs=_VMEM,
    )(fr, mp['dmat'], mp['fb_t'])


# --------------------------- synthetic discriminator ---------------------------

def init_discriminator(key, n_scales=2):
    # (c_in, c_out, kernel, stride); last layer has no activation.
    layer_defs = [(1, 8, 16, 4), (8, 16, 16, 4), (16, 1, 4, 1)]
    params = []
    for _ in range(n_scales):
        layers = []
        for (cin, cout, k, stride) in layer_defs:
            key, k1, k2 = jax.random.split(key, 3)
            w = 0.05 * jax.random.normal(k1, (cout, cin, k), jnp.float32)
            b = 0.01 * jax.random.normal(k2, (cout,), jnp.float32)
            layers.append(dict(
                w_mat=w.reshape(cout, cin * k).astype(jnp.bfloat16),  # pre-reshaped, bf16
                b_col=b.reshape(cout, 1),                             # (C_out, 1) f32
                k=k, stride=stride))
        params.append(layers)
    return params


def conv1d_t(x, layer, *, lrelu):
    # x: (C_in, B, T) f32 -> (C_out, B, n_out) f32 (channel-major, time in lanes).
    C_in, B, T = x.shape
    k, stride = layer['k'], layer['stride']
    C_out = layer['w_mat'].shape[0]
    n_out = (T - k) // stride + 1
    # TODO(synk): do the im2col inside the kernel (shifted pl.ds reads) to avoid
    # materializing the k/stride-times-expanded patch matrix in HBM at real sizes.
    t_idx = jnp.arange(n_out)[:, None] * stride + jnp.arange(k)[None, :]  # (n_out, k)
    patches = jnp.transpose(x[:, :, t_idx], (0, 3, 1, 2))                 # (C_in, k, B, n_out)
    patches = patches.reshape(C_in * k, B * n_out)
    y = matmul_bias_lrelu_t(layer['w_mat'], layer['b_col'],
                            patches.astype(jnp.bfloat16), lrelu=lrelu)
    return y.reshape(C_out, B, n_out)


def avg_pool1d(x, factor):
    B, C, T = x.shape
    T2 = (T // factor) * factor
    return x[:, :, :T2].reshape(B, C, T2 // factor, factor).mean(axis=-1)


def discriminate(audio, disc_params):
    # audio: (B, 1, T)  (B may be the stacked 2B real+fake batch).
    # LeakyReLU slope 0.1 (HiFiGAN convention).
    outs = []
    for s, layers in enumerate(disc_params):
        a = audio if s == 0 else avg_pool1d(audio, 2 ** s)
        x = jnp.transpose(a, (1, 0, 2))          # (C=1, B, T)
        feats = []
        for i, layer in enumerate(layers):
            last = (i == len(layers) - 1)
            x = conv1d_t(x, layer, lrelu=not last)
            if not last:
                feats.append(x)
        outs.append((x, feats))
    return outs


# ------------------------------- HiFiGAN loss -------------------------------

def hifigan_loss(batch, mel_params, disc_params):
    real = batch['audio']          # (B, 1, T)
    pred = batch['pred_audio']     # (B, 1, T)
    mel_real_t = batch['mel']      # (n_mels, B*n_frames), transposed layout (no_grad input)
    B = real.shape[0]

    # mel branch operands (framing glue; mel itself is computed inside the fused kernel)
    frames_pred = frame_audio_t(jnp.squeeze(pred, 1), mel_params).astype(jnp.bfloat16)

    # detach()/no_grad only affect gradients; forward values are identical, so the
    # discriminator runs ONCE on [real; pred] stacked along batch.
    stacked = jnp.concatenate([real, pred], axis=0)       # (2B, 1, T)
    disc = discriminate(stacked, disc_params)
    n_scales = len(disc)
    n_feats = len(disc[0][1])

    def split_rf(x):   # (C, 2B, n) -> real (C, B*n), fake (C, B*n)
        C, _, n = x.shape
        return (x[:, :B, :].reshape(C, B * n), x[:, B:, :].reshape(C, B * n))

    inputs = [frames_pred, mel_params['dmat'], mel_params['fb_t'], mel_real_t]
    inv_d, inv_f = [], []
    for (dout, feats) in disc:
        r, f = split_rf(dout)
        inputs += [r, f]
        inv_d.append(1.0 / float(r.size))
        invs = []
        for ft in feats:
            fr_, ff_ = split_rf(ft)
            inputs += [fr_, ff_]
            invs.append(1.0 / float(fr_.size))
        inv_f.append(tuple(invs))

    # one fused kernel for the whole loss tail: mel(pred) + L1 + all MSE / FM sums
    sums = pl.pallas_call(
        functools.partial(_loss_tail_kernel,
                          n_scales=n_scales, n_feats=n_feats,
                          n_freq_pad=mel_params['n_freq_pad'],
                          inv_mel=1.0 / float(mel_real_t.size),
                          inv_d=tuple(inv_d), inv_f=tuple(inv_f)),
        out_shape=jax.ShapeDtypeStruct((1, 2), jnp.float32),
        in_specs=[_VMEM] * len(inputs),
        out_specs=_VMEM,
    )(*inputs)

    return {'loss_gen': sums[0, 0], 'loss_disc': sums[0, 1]}


# ----------------------------------- main -----------------------------------

if __name__ == "__main__":
    key = jax.random.PRNGKey(0)
    k_audio, k_pred, k_disc = jax.random.split(key, 3)

    # T chosen so the first conv layer exercises the lane-tiled (gridded) matmul path.
    B, T = 2, 1036
    real_audio = 0.5 * jax.random.normal(k_audio, (B, 1, T), jnp.float32)
    pred_audio = 0.5 * jax.random.normal(k_pred, (B, 1, T), jnp.float32)

    mel_params = build_mel_params(n_fft=64, hop=32, n_mels=16, sr=16000)
    disc_params = init_discriminator(k_disc, n_scales=2)

    # ground-truth mel of the real audio (the "no_grad" batch['mel'] input),
    # kept in the transposed (n_mels, B*n_frames) layout used throughout.
    mel_real = mel_spectrogram_t(jnp.squeeze(real_audio, 1), mel_params)

    @jax.jit
    def run(real, pred, mel):
        return hifigan_loss({'audio': real, 'pred_audio': pred, 'mel': mel},
                            mel_params, disc_params)

    out = jax.block_until_ready(run(real_audio, pred_audio, mel_real))
    print("KERNEL_OK")
</pallas_src>

<mosaic_0001>
module attributes {stable_mosaic.version = 11 : i64} {
  func.func @_mel_kernel(%arg0: memref<64x62xbf16, #tpu.memory_space<vmem>>, %arg1: memref<80x64xbf16, #tpu.memory_space<vmem>>, %arg2: memref<16x40xf32, #tpu.memory_space<vmem>>, %arg3: memref<16x62xf32, #tpu.memory_space<vmem>>) attributes {dimension_semantics = [], scalar_prefetch = 0 : i64, scratch_operands = 0 : i64, tpu.core_type = #tpu.core_type<tc>} {
    %c0 = arith.constant 0 : index
    %c0_0 = arith.constant 0 : index
    %0 = vector.load %arg0[%c0, %c0_0] : memref<64x62xbf16, #tpu.memory_space<vmem>>, vector<64x62xbf16>
    %c0_1 = arith.constant 0 : index
    %c0_2 = arith.constant 0 : index
    %1 = vector.load %arg1[%c0_1, %c0_2] : memref<80x64xbf16, #tpu.memory_space<vmem>>, vector<80x64xbf16>
    %c0_3 = arith.constant 0 : index
    %c0_4 = arith.constant 0 : index
    %2 = vector.load %arg2[%c0_3, %c0_4] : memref<16x40xf32, #tpu.memory_space<vmem>>, vector<16x40xf32>
    %cst = arith.constant dense<0.000000e+00> : vector<80x62xf32>
    %3 = tpu.matmul %1, %0, %cst {dimension_numbers = #tpu.dot_dimension_numbers<[1], [0], [0], [1], [0, 0, 1, 1], [], []>} : vector<80x64xbf16>, vector<64x62xbf16>, vector<80x62xf32> -> vector<80x62xf32>
    %4 = vector.extract_strided_slice %3 {offsets = [0, 0], sizes = [40, 62], strides = [1, 1]} : vector<80x62xf32> to vector<40x62xf32>
    %5 = arith.mulf %4, %4 : vector<40x62xf32>
    %6 = vector.extract_strided_slice %3 {offsets = [40, 0], sizes = [40, 62], strides = [1, 1]} : vector<80x62xf32> to vector<40x62xf32>
    %7 = arith.mulf %6, %6 : vector<40x62xf32>
    %8 = arith.addf %5, %7 : vector<40x62xf32>
    %cst_5 = arith.constant dense<0.000000e+00> : vector<16x62xf32>
    %9 = tpu.matmul %2, %8, %cst_5 {dimension_numbers = #tpu.dot_dimension_numbers<[1], [0], [0], [1], [0, 0, 1, 1], [], []>} : vector<16x40xf32>, vector<40x62xf32>, vector<16x62xf32> -> vector<16x62xf32>
    %cst_6 = arith.constant 9.99999974E-6 : f32
    %10 = vector.broadcast %cst_6 : f32 to vector<16x62xf32>
    %11 = arith.maximumf %9, %10 : vector<16x62xf32>
    %12 = math.log %11 : vector<16x62xf32>
    %c0_7 = arith.constant 0 : index
    %c0_8 = arith.constant 0 : index
    %13 = vector.load %arg3[%c0_7, %c0_8] : memref<16x62xf32, #tpu.memory_space<vmem>>, vector<16x62xf32>
    tpu.vector_store %arg3[%c0_7, %c0_8], %12 {strides = array<i32>} : memref<16x62xf32, #tpu.memory_space<vmem>>, vector<16x62xf32>,
    return
  }
}

</mosaic_0001>

<llo_original>
// kernel: tpu_custom_call.1
$region0: #{tpu_custom_call.1}
  #allocation0 [shape = 'u32[]', space=smem, size = 0x4, offset = 0x4, fixed_abs, tag = 'smem constant byte address 0x4 - core index']
  #allocation1 [shape = 'u32[144,128]{1,0:T(1,128)}', space=vmem, size = 0x12000, scoped, tag = 'internal scratch']
  %s0 = inlined_call_operand.vmem [shape: bf16[64,62], index: 0, kind: input, shape index: {}]
  %s1 = inlined_call_operand.vmem [shape: bf16[80,64], index: 1, kind: input, shape index: {}]
  %s2 = inlined_call_operand.vmem [shape: f32[16,40], index: 2, kind: input, shape index: {}]
  %s3 = inlined_call_operand.hbm [shape: f32[16,62], index: 3, kind: output, shape index: {}]
  %s4 = sld [smem:[#allocation0]]
  $region22: #{tpu_custom_call.1} parent=0
    _
  %s6 = ssub.s32 1, %s4
  %s7 = scalar_select 0, %s6, %s4
  $region1: #{tpu_custom_call.1} parent=0
    #allocation2 [shape = 'u8[8192]{0}', space=vmem, size = 0x2000, scoped, tag = 'output window, operand 0, single buffered']
    #allocation3 [shape = 's32[1]{0}', space=sflag, size = 0x4, scoped, tag = 'scoped memory for tpu_custom_call.1']
    %8 = vsyncpa [#allocation3], 0
    // Predicated region
    $region2: #{tpu_custom_call.1} parent=1 // pred_check
      _
    $region3: #{tpu_custom_call.1} parent=1 // pred_check_branch
      %10 = sbr.rel (0) target = $region5
    $region4: #{tpu_custom_call.1} parent=1 // pred_region
      _
    $region5: #{tpu_custom_call.1} parent=1 // pred_fallthru
      _
    // Predicated region
    $region6: #{tpu_custom_call.1} parent=1 // pred_check
      _
    $region7: #{tpu_custom_call.1} parent=1 // pred_check_branch
      %12 = sbr.rel (0) target = $region9
    $region8: #{tpu_custom_call.1} parent=1 // pred_region
      _
    $region9: #{tpu_custom_call.1} parent=1 // pred_fallthru
      _
    // Predicated region
    $region10: #{tpu_custom_call.1} parent=1 // pred_check
      _
    $region11: #{tpu_custom_call.1} parent=1 // pred_check_branch
      %14 = sbr.rel (0) target = $region13
    $region12: #{tpu_custom_call.1} parent=1 // pred_region
      _
    $region13: #{tpu_custom_call.1} parent=1 // pred_fallthru
      _
    %v16 = vld [vmem:[%s0] sm:$0xf]
    %v17 = vld [vmem:[%s0 + $0x4] sm:$0xf]
    %v18 = vld [vmem:[%s0 + $0x8] sm:$0xf]
    %v19 = vld [vmem:[%s0 + $0xc] sm:$0xf]
    %v20 = vld [vmem:[%s0 + $0x10] sm:$0xf]
    %v21 = vld [vmem:[%s0 + $0x14] sm:$0xf]
    %v22 = vld [vmem:[%s0 + $0x18] sm:$0xf]
    %v23 = vld [vmem:[%s0 + $0x1c] sm:$0xf]
    %v24 = vld [vmem:[%s1] sm:$0xf]
    %v25 = vld [vmem:[%s1 + $0x4] sm:$0xf]
    %v26 = vld [vmem:[%s1 + $0x8] sm:$0xf]
    %v27 = vld [vmem:[%s1 + $0xc] sm:$0xf]
    %v28 = vld [vmem:[%s1 + $0x10] sm:$0xf]
    %v29 = vld [vmem:[%s1 + $0x14] sm:$0xf]
    %v30 = vld [vmem:[%s1 + $0x18] sm:$0xf]
    %v31 = vld [vmem:[%s1 + $0x1c] sm:$0xf]
    %v32 = vld [vmem:[%s1 + $0x20] sm:$0xf]
    %v33 = vld [vmem:[%s1 + $0x24] sm:$0xf]
    %v34 = vld [vmem:[%s2] sm:$0xff]
    %v35 = vld [vmem:[%s2 + $0x8] sm:$0xff]
    %v46 = vunpack.c.l.b16 %v24
    %v47 = vunpack.c.l.b16 %v25
    %v48 = vunpack.c.l.b16 %v26
    %v49 = vunpack.c.l.b16 %v27
    %v50 = vunpack.c.l.b16 %v28
    %v51 = vunpack.c.l.b16 %v29
    %v52 = vunpack.c.l.b16 %v30
    %v53 = vunpack.c.l.b16 %v31
    %v54 = vunpack.c.l.b16 %v32
    %v55 = vunpack.c.l.b16 %v33
    %v56 = vpack.c.b16 %v47, %v46
    %v57 = vpack.c.b16 %v49, %v48
    %v58 = vpack.c.b16 %v51, %v50
    %v59 = vpack.c.b16 %v53, %v52
    %v60 = vpack.c.b16 %v55, %v54
    %v69 = vunpack.c.l.b16 %v16
    %v70 = vunpack.c.l.b16 %v17
    %v71 = vunpack.c.l.b16 %v18
    %v72 = vunpack.c.l.b16 %v19
    %v73 = vunpack.c.l.b16 %v20
    %v74 = vunpack.c.l.b16 %v21
    %v75 = vunpack.c.l.b16 %v22
    %v76 = vunpack.c.l.b16 %v23
    %v77 = vpack.c.b16 %v70, %v69
    %v78 = vpack.c.b16 %v72, %v71
    %v79 = vpack.c.b16 %v74, %v73
    %v80 = vpack.c.b16 %v76, %v75
    %vm85 = vcmask 523264
    %v87 = vsel %vm85, %v56, 0
    %v90 = vsel %vm85, %v57, 0
    %v93 = vsel %vm85, %v58, 0
    %v96 = vsel %vm85, %v59, 0
    %v99 = vsel %vm85, %v60, 0
    %101 = vmatprep.subr.bf16.mxu0 0
    %102 = vmatpush1.bf16.msra.mxu0 0
    %103 = vmatprep.subr.bf16.mxu0 0
    %104 = vmatpush1.bf16.msra.mxu0 0
    %105 = vmatprep.subr.bf16.mxu0 0
    %106 = vmatpush1.bf16.msra.mxu0 0
    %107 = vmatprep.subr.bf16.mxu0 0
    %108 = vmatpush1.bf16.msra.mxu0 0
    %109 = vmatprep.subr.bf16.mxu0 0
    %110 = vmatpush1.bf16.msra.mxu0 %v80
    %111 = vmatprep.subr.bf16.mxu0 0
    %112 = vmatpush1.bf16.msra.mxu0 %v79
    %113 = vmatprep.subr.bf16.mxu0 0
    %114 = vmatpush1.bf16.msra.mxu0 %v78
    %115 = vmatprep.subr.bf16.mxu0 0
    %116 = vmatpush1.bf16.msra.mxu0 %v77
    %117 = vmatprep.subr.bf16.mxu0 0
    %118 = vmatpush2.bf16.msra.mxu0 0
    %119 = vmatprep.subr.bf16.mxu0 0
    %120 = vmatpush2.bf16.msra.mxu0 0
    %121 = vmatprep.subr.bf16.mxu0 0
    %122 = vmatpush2.bf16.msra.mxu0 0
    %123 = vmatprep.subr.bf16.mxu0 0
    %124 = vmatpush2.bf16.msra.mxu0 0
    %125 = vmatprep.subr.bf16.mxu0 0
    %126 = vmatpush2.bf16.msra.mxu0 0
    %127 = vmatprep.subr.bf16.mxu0 0
    %128 = vmatpush2.bf16.msra.mxu0 0
    %129 = vmatprep.subr.bf16.mxu0 0
    %130 = vmatpush2.bf16.msra.mxu0 0
    %131 = vmatprep.subr.bf16.mxu0 0
    %132 = vmatpush2.bf16.msra.mxu0 0
    %133 = vmatprep.mubr.bf16.mxu0 0
    %134 = vmatmul.mubr.bf16.gmra.mxu0 %v87
    %v135 = vpop.f32.mrf.mxu0
    %v136 = vadd.f32 0.0, %v135
    %v137 = vpop.f32.mrf.mxu0
    %v138 = vpop.f32.mrf.mxu0
    %v139 = vadd.f32 0.0, %v138
    %v140 = vpop.f32.mrf.mxu0
    %141 = vmatprep.mubr.bf16.mxu0 0
    %142 = vmatmul.mubr.bf16.gmra.mxu0 %v90
    %v143 = vpop.f32.mrf.mxu0
    %v144 = vadd.f32 0.0, %v143
    %v145 = vpop.f32.mrf.mxu0
    %v146 = vpop.f32.mrf.mxu0
    %v147 = vadd.f32 0.0, %v146
    %v148 = vpop.f32.mrf.mxu0
    %149 = vmatprep.mubr.bf16.mxu0 0
    %150 = vmatmul.mubr.bf16.gmra.mxu0 %v93
    %v151 = vpop.f32.mrf.mxu0
    %v152 = vadd.f32 0.0, %v151
    %v153 = vpop.f32.mrf.mxu0
    %v154 = vpop.f32.mrf.mxu0
    %v155 = vadd.f32 0.0, %v154
    %v156 = vpop.f32.mrf.mxu0
    %157 = vmatprep.mubr.bf16.mxu0 0
    %158 = vmatmul.mubr.bf16.gmra.mxu0 %v96
    %v159 = vpop.f32.mrf.mxu0
    %v160 = vadd.f32 0.0, %v159
    %v161 = vpop.f32.mrf.mxu0
    %v162 = vpop.f32.mrf.mxu0
    %v163 = vadd.f32 0.0, %v162
    %v164 = vpop.f32.mrf.mxu0
    %165 = vmatprep.mubr.bf16.mxu0 0
    %166 = vmatmul.mubr.bf16.gmra.mxu0 %v99
    %v167 = vpop.f32.mrf.mxu0
    %v168 = vadd.f32 0.0, %v167
    %v169 = vpop.f32.mrf.mxu0
    %v170 = vpop.f32.mrf.mxu0
    %v171 = vadd.f32 0.0, %v170
    %v172 = vpop.f32.mrf.mxu0
    %173 = vdwg.mxu0
    %v174 = vmul.f32 %v136, %v136
    %v175 = vmul.f32 %v139, %v139
    %v176 = vmul.f32 %v144, %v144
    %v177 = vmul.f32 %v147, %v147
    %v178 = vmul.f32 %v152, %v152
    %v179 = vmul.f32 %v155, %v155
    %v180 = vmul.f32 %v160, %v160
    %v181 = vmul.f32 %v163, %v163
    %v182 = vmul.f32 %v168, %v168
    %v183 = vmul.f32 %v171, %v171
    %v184 = vadd.f32 %v174, %v179
    %v185 = vadd.f32 %v175, %v180
    %v186 = vadd.f32 %v176, %v181
    %v187 = vadd.f32 %v177, %v182
    %v188 = vadd.f32 %v178, %v183
    %vm189 = vcmask 326656
    %v191 = vsel %vm189, %v34, 0
    %v194 = vsel %vm189, %v35, 0
    %196 = vmatprep.subr.mxu0 0.0
    %197 = vmatpush1.msra.mxu0 0.0
    %198 = vmatprep.subr.mxu0 0.0
    %199 = vmatpush1.msra.mxu0 0.0
    %200 = vmatprep.subr.mxu0 0.0
    %201 = vmatpush1.msra.mxu0 0.0
    %202 = vmatprep.subr.mxu0 0.0
    %203 = vmatpush1.msra.mxu0 0.0
    %204 = vmatprep.subr.mxu0 0.0
    %205 = vmatpush1.msra.mxu0 0.0
    %206 = vmatprep.subr.mxu0 0.0
    %207 = vmatpush1.msra.mxu0 0.0
    %208 = vmatprep.subr.mxu0 0.0
    %209 = vmatpush1.msra.mxu0 0.0
    %210 = vmatprep.subr.mxu0 0.0
    %211 = vmatpush1.msra.mxu0 0.0
    %212 = vmatprep.subr.mxu0 0.0
    %213 = vmatpush1.msra.mxu0 0.0
    %214 = vmatprep.subr.mxu0 0.0
    %215 = vmatpush1.msra.mxu0 0.0
    %216 = vmatprep.subr.mxu0 0.0
    %217 = vmatpush1.msra.mxu0 0.0
    %218 = vmatprep.subr.mxu0 0.0
    %219 = vmatpush1.msra.mxu0 %v188
    %220 = vmatprep.subr.mxu0 0.0
    %221 = vmatpush1.msra.mxu0 %v187
    %222 = vmatprep.subr.mxu0 0.0
    %223 = vmatpush1.msra.mxu0 %v186
    %224 = vmatprep.subr.mxu0 0.0
    %225 = vmatpush1.msra.mxu0 %v185
    %226 = vmatprep.subr.mxu0 0.0
    %227 = vmatpush1.msra.mxu0 %v184
    %228 = vmatprep.subr.mxu0 0.0
    %229 = vmatpush2.msra.mxu0 0.0
    %230 = vmatprep.subr.mxu0 0.0
    %231 = vmatpush2.msra.mxu0 0.0
    %232 = vmatprep.subr.mxu0 0.0
    %233 = vmatpush2.msra.mxu0 0.0
    %234 = vmatprep.subr.mxu0 0.0
    %235 = vmatpush2.msra.mxu0 0.0
    %236 = vmatprep.subr.mxu0 0.0
    %237 = vmatpush2.msra.mxu0 0.0
    %238 = vmatprep.subr.mxu0 0.0
    %239 = vmatpush2.msra.mxu0 0.0
    %240 = vmatprep.subr.mxu0 0.0
    %241 = vmatpush2.msra.mxu0 0.0
    %242 = vmatprep.subr.mxu0 0.0
    %243 = vmatpush2.msra.mxu0 0.0
    %244 = vmatprep.subr.mxu0 0.0
    %245 = vmatpush2.msra.mxu0 0.0
    %246 = vmatprep.subr.mxu0 0.0
    %247 = vmatpush2.msra.mxu0 0.0
    %248 = vmatprep.subr.mxu0 0.0
    %249 = vmatpush2.msra.mxu0 0.0
    %250 = vmatprep.subr.mxu0 0.0
    %251 = vmatpush2.msra.mxu0 0.0
    %252 = vmatprep.subr.mxu0 0.0
    %253 = vmatpush2.msra.mxu0 0.0
    %254 = vmatprep.subr.mxu0 0.0
    %255 = vmatpush2.msra.mxu0 0.0
    %256 = vmatprep.subr.mxu0 0.0
    %257 = vmatpush2.msra.mxu0 0.0
    %258 = vmatprep.subr.mxu0 0.0
    %259 = vmatpush2.msra.mxu0 0.0
    %260 = vmatprep.mubr.f32.mxu0 0.0
    %261 = vmatmul.mubr.f32.gmra.mxu0 %v191
    %v262 = vpop.f32.mrf.mxu0
    %v263 = vadd.f32 0.0, %v262
    %v264 = vpop.f32.mrf.mxu0
    %265 = vmatprep.mubr.f32.mxu0 0.0
    %266 = vmatmul.mubr.f32.gmra.mxu0 %v194
    %v267 = vpop.f32.mrf.mxu0
    %v268 = vadd.f32 0.0, %v267
    %v269 = vpop.f32.mrf.mxu0
    %270 = vdwg.mxu0
    %v271 = vmax.f32 %v263, 1e-05
    %v272 = vmax.f32 %v268, 1e-05
    %v273 = vlog2.pop %v271
    %v274 = vmul.f32 %v273, 0.6931472
    %v275 = vlog2.pop %v272
    %v276 = vmul.f32 %v275, 0.6931472
    %vm277 = vcmask 506880
    %278 = vst.msk [vmem:[#allocation2] sm:$0xff] %vm277, %v274
    %279 = vst.msk [vmem:[#allocation2 + $0x8] sm:$0xff] %vm277, %v276
    // Predicated region
    $region14: #{tpu_custom_call.1} parent=1 // pred_check
      _
    $region15: #{tpu_custom_call.1} parent=1 // pred_check_branch
      %281 = sbr.rel (0) target = $region17
    $region16: #{tpu_custom_call.1} parent=1 // pred_region
      %s283 = ssub.s32 256, 256
      %284 = vsyncadd [#allocation3], %s283
      %s285 = sshll.u32 [#allocation2], 4
      %s286 = int_to_ptr.vmem [resolvable:$true] %s285
      %291 = dma.vmem_to_hbm [thread:$0]  %s286, 256, %s3, [#allocation3], 128, 128, 8
    $region17: #{tpu_custom_call.1} parent=1 // pred_fallthru
      _
    // Predicated region
    $region18: #{tpu_custom_call.1} parent=1 // pred_check
      _
    $region19: #{tpu_custom_call.1} parent=1 // pred_check_branch
      %293 = sbr.rel (0) target = $region21
    $region20: #{tpu_custom_call.1} parent=1 // pred_region
      %294 = dma.done [#allocation3], 256
    $region21: #{tpu_custom_call.1} parent=1 // pred_fallthru
      _
    %295 = vsyncpa [#allocation3], 1

</llo_original>
